<compile_context>
chip_gen: v5e
topology: v5e:2x2
jax: 0.10.0
libtpu: 0.0.40
codegen_flags: <defaults>
</compile_context>

<pallas_src>
import functools

import jax
import jax.numpy as jnp
from jax.experimental import pallas as pl
from jax.experimental.pallas import tpu as pltpu


def _vmem_capacity_bytes():
    try:
        return int(pltpu.get_tpu_info().vmem_capacity_bytes)
    except Exception:
        return 64 * 1024 * 1024  # conservative (v7x per-TensorCore VMEM)


# --------------------------------------------------------------------------
# Resident (single-pass) kernel: whole (N, C, HW) slab lives in VMEM.
# --------------------------------------------------------------------------
def _bn_resident_kernel(x_ref, gain_ref, bias_ref,
                        out_ref, mean_ref, var_ref, *, eps, inv_m):
    # x_ref: (N, C, HW); gain/bias/mean/var refs: (C, 1) f32
    x = x_ref[...].astype(jnp.float32)
    s = jnp.sum(jnp.sum(x, axis=2, keepdims=True), axis=0, keepdims=True)        # (1,C,1)
    s2 = jnp.sum(jnp.sum(x * x, axis=2, keepdims=True), axis=0, keepdims=True)   # (1,C,1)
    m = s * inv_m
    # NOTE: E[x^2] - E[x]^2 in f32 matches torch manual_bn's exact formula.
    var = s2 * inv_m - m * m
    scale = jax.lax.rsqrt(var + eps) * gain_ref[...][None]                        # (1,C,1)
    shift = m * scale - bias_ref[...][None]
    out_ref[...] = (x * scale - shift).astype(out_ref.dtype)
    mean_ref[...] = m[0]
    var_ref[...] = var[0]


# --------------------------------------------------------------------------
# Tiled pass 1: per-channel statistics (accumulate over N and HW tiles).
# --------------------------------------------------------------------------
def _bn_stats_kernel(x_ref, gain_ref, bias_ref,
                     mean_ref, var_ref, scale_ref, shift_ref,
                     sum_acc, sq_acc, *, eps, inv_m):
    n_id = pl.program_id(1)
    hw_id = pl.program_id(2)

    @pl.when(jnp.logical_and(n_id == 0, hw_id == 0))
    def _():
        sum_acc[...] = jnp.zeros_like(sum_acc)
        sq_acc[...] = jnp.zeros_like(sq_acc)

    # Cast per tile only (never the whole array); accumulate in f32.
    xt = x_ref[...].astype(jnp.float32)                       # (C_tile, HW_tile)
    sum_acc[...] += jnp.sum(xt, axis=1, keepdims=True)        # (C_tile, 1)
    sq_acc[...] += jnp.sum(xt * xt, axis=1, keepdims=True)    # (C_tile, 1)

    is_last = jnp.logical_and(n_id == pl.num_programs(1) - 1,
                              hw_id == pl.num_programs(2) - 1)

    @pl.when(is_last)
    def _():
        m = sum_acc[...] * inv_m
        var = sq_acc[...] * inv_m - m * m
        scale = jax.lax.rsqrt(var + eps) * gain_ref[...]
        shift = m * scale - bias_ref[...]
        mean_ref[...] = m
        var_ref[...] = var
        scale_ref[...] = scale
        shift_ref[...] = shift


# --------------------------------------------------------------------------
# Tiled pass 2: elementwise apply (fully parallel, lane-dense output tiles).
# TODO(synk): in a full model this pass should be fused into the consumer
# (e.g. the next conv epilogue) using the (scale, shift) outputs of pass 1.
# --------------------------------------------------------------------------
def _bn_apply_kernel(x_ref, scale_ref, shift_ref, out_ref):
    x = x_ref[...].astype(jnp.float32)                        # (C_tile, HW_tile)
    out_ref[...] = (x * scale_ref[...] - shift_ref[...]).astype(out_ref.dtype)


def _choose_tiles(C, HW, itemsize, tile_budget_bytes):
    # Channel (sublane) tile: divisor of C that is a multiple of 8, else full C.
    if C % 8 == 0:
        c_tile = 8
        for cand in (256, 128, 64, 32, 16, 8):
            if C % cand == 0:
                c_tile = cand
                break
    else:
        c_tile = C
    # Spatial (lane) tile: power-of-two multiple of 128 dividing HW, sized so a
    # double-buffered x tile fits the budget; else full HW.
    if HW % 128 == 0:
        max_elems = max(128, tile_budget_bytes // (2 * max(c_tile, 8) * itemsize))
        hw_tile = 128
        while (hw_tile * 2 <= HW and HW % (hw_tile * 2) == 0
               and hw_tile * 2 <= max_elems):
            hw_tile *= 2
    else:
        hw_tile = HW
    return c_tile, hw_tile


def my_bn_forward(x_nchw, gain_c, bias_c, stored_mean, stored_var,
                  eps=1e-5, momentum=0.1, force_tiled=False):
    """Training-mode forward of myBN (non-standing branch).

    x_nchw: (N, C, H, W);  gain_c, bias_c: (C,)  (== (1, C, 1, 1) broadcast)
    Returns (out_nchw, new_stored_mean, new_stored_var).
    """
    N, C, H, W = x_nchw.shape
    HW = H * W
    M = N * HW
    inv_m = 1.0 / float(M)
    itemsize = jnp.dtype(x_nchw.dtype).itemsize

    # Free, contiguous reshape (no transpose): HW lands on the lane axis.
    x3 = x_nchw.reshape(N, C, HW)
    gain2 = gain_c.reshape(C, 1).astype(jnp.float32)
    bias2 = bias_c.reshape(C, 1).astype(jnp.float32)

    vmem_cap = _vmem_capacity_bytes()
    stats_f32 = jax.ShapeDtypeStruct((C, 1), jnp.float32)

    # Rough resident-path footprint: x + its f32 cast + f32 temp + out (+pad).
    resident_need = N * max(C, 8) * HW * (2 * itemsize + 8) + (1 << 20)
    use_resident = (not force_tiled) and resident_need <= int(0.4 * vmem_cap)

    if use_resident:
        vmem_limit = int(min(0.9 * vmem_cap, max(2 * resident_need, 32 << 20)))
        out3, mean2, var2 = pl.pallas_call(
            functools.partial(_bn_resident_kernel, eps=eps, inv_m=inv_m),
            out_shape=(jax.ShapeDtypeStruct((N, C, HW), x_nchw.dtype),
                       stats_f32, stats_f32),
            in_specs=[pl.BlockSpec(memory_space=pltpu.VMEM)] * 3,
            out_specs=(pl.BlockSpec(memory_space=pltpu.VMEM),) * 3,
            compiler_params=pltpu.CompilerParams(vmem_limit_bytes=vmem_limit),
        )(x3, gain2, bias2)
    else:
        c_tile, hw_tile = _choose_tiles(C, HW, itemsize, vmem_cap // 4)
        n_c = C // c_tile
        n_hw = HW // hw_tile

        x_tile_bytes = max(c_tile, 8) * hw_tile * itemsize
        small = 16 * max(c_tile, 8) * 128 * 4 + (1 << 20)
        need = 4 * x_tile_bytes + small            # x + out, double-buffered
        vmem_limit = int(min(0.9 * vmem_cap, max(2 * need, 32 << 20)))

        x_spec = pl.BlockSpec((None, c_tile, hw_tile),
                              lambda c, n, hw: (n, c, hw))
        vec_spec = pl.BlockSpec((c_tile, 1), lambda c, n, hw: (c, 0))

        # Pass 1: statistics.  Channel blocks are parallel (megacore on v7x);
        # the (N, HW) reduction axes are "arbitrary".
        mean2, var2, scale2, shift2 = pl.pallas_call(
            functools.partial(_bn_stats_kernel, eps=eps, inv_m=inv_m),
            grid=(n_c, N, n_hw),
            out_shape=(stats_f32,) * 4,
            in_specs=[x_spec, vec_spec, vec_spec],
            out_specs=(vec_spec,) * 4,
            scratch_shapes=[pltpu.VMEM((c_tile, 1), jnp.float32)] * 2,
            compiler_params=pltpu.CompilerParams(
                dimension_semantics=("parallel", "arbitrary", "arbitrary"),
                vmem_limit_bytes=vmem_limit),
        )(x3, gain2, bias2)

        # Pass 2: normalize + affine, fully parallel, lane-dense stores.
        out3 = pl.pallas_call(
            _bn_apply_kernel,
            grid=(n_c, N, n_hw),
            out_shape=jax.ShapeDtypeStruct((N, C, HW), x_nchw.dtype),
            in_specs=[x_spec, vec_spec, vec_spec],
            out_specs=x_spec,
            compiler_params=pltpu.CompilerParams(
                dimension_semantics=("parallel", "parallel", "parallel"),
                vmem_limit_bytes=vmem_limit),
        )(x3, scale2, shift2)

    out_nchw = out3.reshape(N, C, H, W)

    # Running-stat update in f32 (non-standing branch of myBN.forward).
    mean_c = mean2.reshape(C)
    var_c = var2.reshape(C)
    new_stored_mean = (stored_mean.astype(jnp.float32) * (1.0 - momentum)
                       + mean_c * momentum).astype(stored_mean.dtype)
    new_stored_var = (stored_var.astype(jnp.float32) * (1.0 - momentum)
                      + var_c * momentum).astype(stored_var.dtype)
    return out_nchw, new_stored_mean, new_stored_var


def _reference(x, gain, bias, eps):
    xf = x.astype(jnp.float32)
    m = jnp.mean(xf, axis=(0, 2, 3), keepdims=True)
    var = jnp.mean(xf * xf, axis=(0, 2, 3), keepdims=True) - m * m
    scale = jax.lax.rsqrt(var + eps) * gain.reshape(1, -1, 1, 1)
    shift = m * scale - bias.reshape(1, -1, 1, 1)
    return (xf * scale - shift).astype(x.dtype)


if __name__ == "__main__":
    key = jax.random.PRNGKey(0)
    k1, k2, k3 = jax.random.split(key, 3)

    N, C, H, W = 2, 4, 16, 16
    x = jax.random.normal(k1, (N, C, H, W), dtype=jnp.float32)
    gain = 1.0 + 0.1 * jax.random.normal(k2, (C,), dtype=jnp.float32)
    bias = 0.1 * jax.random.normal(k3, (C,), dtype=jnp.float32)

    stored_mean = jnp.zeros((C,), dtype=jnp.float32)   # register_buffer init
    stored_var = jnp.ones((C,), dtype=jnp.float32)     # register_buffer init
    momentum = 0.1
    eps = 1e-5

    # Plain-JAX reference (mirrors manual_bn / fused_bn / momentum update).
    ref_out = _reference(x, gain, bias, eps)
    ref_mean = jnp.mean(x, axis=(0, 2, 3))
    ref_var = jnp.mean(x * x, axis=(0, 2, 3)) - ref_mean * ref_mean
    ref_sm = stored_mean * (1.0 - momentum) + ref_mean * momentum
    ref_sv = stored_var * (1.0 - momentum) + ref_var * momentum

    # Default dispatch (small shape -> resident single-pass path).
    out_r, sm_r, sv_r = my_bn_forward(x, gain, bias, stored_mean, stored_var,
                                      eps=eps, momentum=momentum)
    # Also exercise the tiled two-pass path explicitly.
    out_t, sm_t, sv_t = my_bn_forward(x, gain, bias, stored_mean, stored_var,
                                      eps=eps, momentum=momentum,
                                      force_tiled=True)
    jax.block_until_ready((out_r, sm_r, sv_r, out_t, sm_t, sv_t))

    for o, sm, sv in ((out_r, sm_r, sv_r), (out_t, sm_t, sv_t)):
        assert jnp.allclose(o, ref_out, atol=1e-5, rtol=1e-5), "out mismatch"
        assert jnp.allclose(sm, ref_sm, atol=1e-5, rtol=1e-5), "mean mismatch"
        assert jnp.allclose(sv, ref_sv, atol=1e-5, rtol=1e-5), "var mismatch"

    print("KERNEL_OK")
</pallas_src>

<mosaic_0001>
module attributes {stable_mosaic.version = 11 : i64} {
  func.func @_bn_resident_kernel(%arg0: memref<2x4x256xf32, #tpu.memory_space<vmem>>, %arg1: memref<4x1xf32, #tpu.memory_space<vmem>>, %arg2: memref<4x1xf32, #tpu.memory_space<vmem>>, %arg3: memref<2x4x256xf32, #tpu.memory_space<vmem>>, %arg4: memref<4x1xf32, #tpu.memory_space<vmem>>, %arg5: memref<4x1xf32, #tpu.memory_space<vmem>>) attributes {dimension_semantics = [], scalar_prefetch = 0 : i64, scratch_operands = 0 : i64, tpu.core_type = #tpu.core_type<tc>} {
    %c0 = arith.constant 0 : index
    %c0_0 = arith.constant 0 : index
    %c0_1 = arith.constant 0 : index
    %0 = vector.load %arg0[%c0, %c0_0, %c0_1] : memref<2x4x256xf32, #tpu.memory_space<vmem>>, vector<2x4x256xf32>
    %cst = arith.constant dense<0.000000e+00> : vector<2x4xf32>
    %1 = vector.multi_reduction <add>, %0, %cst [2] : vector<2x4x256xf32> to vector<2x4xf32>
    %2 = vector.shape_cast %1 : vector<2x4xf32> to vector<2x4x1xf32>
    %cst_2 = arith.constant dense<0.000000e+00> : vector<4x1xf32>
    %3 = vector.multi_reduction <add>, %2, %cst_2 [0] : vector<2x4x1xf32> to vector<4x1xf32>
    %4 = vector.shape_cast %3 : vector<4x1xf32> to vector<1x4x1xf32>
    %5 = arith.mulf %0, %0 : vector<2x4x256xf32>
    %cst_3 = arith.constant dense<0.000000e+00> : vector<2x4xf32>
    %6 = vector.multi_reduction <add>, %5, %cst_3 [2] : vector<2x4x256xf32> to vector<2x4xf32>
    %7 = vector.shape_cast %6 : vector<2x4xf32> to vector<2x4x1xf32>
    %cst_4 = arith.constant dense<0.000000e+00> : vector<4x1xf32>
    %8 = vector.multi_reduction <add>, %7, %cst_4 [0] : vector<2x4x1xf32> to vector<4x1xf32>
    %9 = vector.shape_cast %8 : vector<4x1xf32> to vector<1x4x1xf32>
    %cst_5 = arith.constant 0.001953125 : f32
    %10 = vector.broadcast %cst_5 : f32 to vector<1x4x1xf32>
    %11 = arith.mulf %4, %10 : vector<1x4x1xf32>
    %cst_6 = arith.constant 0.001953125 : f32
    %12 = vector.broadcast %cst_6 : f32 to vector<1x4x1xf32>
    %13 = arith.mulf %9, %12 : vector<1x4x1xf32>
    %14 = arith.mulf %11, %11 : vector<1x4x1xf32>
    %15 = arith.subf %13, %14 : vector<1x4x1xf32>
    %cst_7 = arith.constant 9.99999974E-6 : f32
    %16 = vector.broadcast %cst_7 : f32 to vector<1x4x1xf32>
    %17 = arith.addf %15, %16 : vector<1x4x1xf32>
    %18 = math.rsqrt %17 : vector<1x4x1xf32>
    %c0_8 = arith.constant 0 : index
    %c0_9 = arith.constant 0 : index
    %19 = vector.load %arg1[%c0_8, %c0_9] : memref<4x1xf32, #tpu.memory_space<vmem>>, vector<4x1xf32>
    %20 = vector.shape_cast %19 : vector<4x1xf32> to vector<1x4x1xf32>
    %21 = arith.mulf %18, %20 : vector<1x4x1xf32>
    %22 = arith.mulf %11, %21 : vector<1x4x1xf32>
    %c0_10 = arith.constant 0 : index
    %c0_11 = arith.constant 0 : index
    %23 = vector.load %arg2[%c0_10, %c0_11] : memref<4x1xf32, #tpu.memory_space<vmem>>, vector<4x1xf32>
    %24 = vector.shape_cast %23 : vector<4x1xf32> to vector<1x4x1xf32>
    %25 = arith.subf %22, %24 : vector<1x4x1xf32>
    %26 = vector.broadcast %21 : vector<1x4x1xf32> to vector<2x4x256xf32>
    %27 = arith.mulf %0, %26 : vector<2x4x256xf32>
    %28 = vector.broadcast %25 : vector<1x4x1xf32> to vector<2x4x256xf32>
    %29 = arith.subf %27, %28 : vector<2x4x256xf32>
    %c0_12 = arith.constant 0 : index
    %c0_13 = arith.constant 0 : index
    %c0_14 = arith.constant 0 : index
    %30 = vector.load %arg3[%c0_12, %c0_13, %c0_14] : memref<2x4x256xf32, #tpu.memory_space<vmem>>, vector<2x4x256xf32>
    tpu.vector_store %arg3[%c0_12, %c0_13, %c0_14], %29 {strides = array<i32>} : memref<2x4x256xf32, #tpu.memory_space<vmem>>, vector<2x4x256xf32>,
    %31 = vector.shape_cast %11 : vector<1x4x1xf32> to vector<4x1xf32>
    %c0_15 = arith.constant 0 : index
    %c0_16 = arith.constant 0 : index
    %32 = vector.load %arg4[%c0_15, %c0_16] : memref<4x1xf32, #tpu.memory_space<vmem>>, vector<4x1xf32>
    tpu.vector_store %arg4[%c0_15, %c0_16], %31 {strides = array<i32>} : memref<4x1xf32, #tpu.memory_space<vmem>>, vector<4x1xf32>,
    %33 = vector.shape_cast %15 : vector<1x4x1xf32> to vector<4x1xf32>
    %c0_17 = arith.constant 0 : index
    %c0_18 = arith.constant 0 : index
    %34 = vector.load %arg5[%c0_17, %c0_18] : memref<4x1xf32, #tpu.memory_space<vmem>>, vector<4x1xf32>
    tpu.vector_store %arg5[%c0_17, %c0_18], %33 {strides = array<i32>} : memref<4x1xf32, #tpu.memory_space<vmem>>, vector<4x1xf32>,
    return
  }
}

</mosaic_0001>

<llo_original>
// kernel: tpu_custom_call.1
$region0: #{tpu_custom_call.1}
  #allocation0 [shape = 'u32[]', space=smem, size = 0x4, offset = 0x4, fixed_abs, tag = 'smem constant byte address 0x4 - core index']
  #allocation1 [shape = 'u32[72,128]{1,0:T(1,128)}', space=vmem, size = 0x9000, scoped, tag = 'internal scratch']
  %s0 = inlined_call_operand.hbm [shape: f32[2,4,256], index: 0, kind: input, shape index: {}]
  %s1 = inlined_call_operand.vmem [shape: f32[4,1], index: 1, kind: input, shape index: {}]
  %s2 = inlined_call_operand.vmem [shape: f32[4,1], index: 2, kind: input, shape index: {}]
  %s3 = inlined_call_operand.hbm [shape: f32[2,4,256], index: 3, kind: output, shape index: {0}]
  %s4 = inlined_call_operand.vmem [shape: f32[4,1], index: 4, kind: output, shape index: {1}]
  %s5 = inlined_call_operand.vmem [shape: f32[4,1], index: 5, kind: output, shape index: {2}]
  %6 = xla_tuple %s3, %s4, %s5
  %s7 = sld [smem:[#allocation0]]
  $region42: #{tpu_custom_call.1} parent=0
    _
  %s9 = ssub.s32 1, %s7
  %s10 = scalar_select 0, %s9, %s7
  $region1: #{tpu_custom_call.1} parent=0
    #allocation2 [shape = 'u8[8192]{0}', space=vmem, size = 0x2000, scoped, tag = 'input window, operand 0, single buffered']
    #allocation3 [shape = 's32[1]{0}', space=sflag, size = 0x4, scoped, tag = 'scoped memory for tpu_custom_call.1']
    #allocation4 [shape = 's32[1]{0}', space=sflag, size = 0x4, scoped, tag = 'scoped memory for tpu_custom_call.1']
    #allocation5 [shape = 'u8[8192]{0}', space=vmem, size = 0x2000, scoped, tag = 'output window, operand 0, single buffered']
    %11 = vsyncpa [#allocation3], 0
    %12 = vsyncpa [#allocation4], 0
    // Predicated region
    $region2: #{tpu_custom_call.1} parent=1 // pred_check
      _
    $region3: #{tpu_custom_call.1} parent=1 // pred_check_branch
      %14 = sbr.rel (0) target = $region5
    $region4: #{tpu_custom_call.1} parent=1 // pred_region
      %16 = vsyncadd [#allocation3], 0
      %s17 = sshll.u32 %s0, 4
      %s18 = int_to_ptr.hbm [resolvable:$true] %s17
      %s19 = sshll.u32 [#allocation2], 4
      %s20 = int_to_ptr.vmem [resolvable:$true] %s19
      %25 = dma.hbm_to_vmem [thread:$0]  %s18, 256, %s20, [#allocation3], 128, 128, 8
    $region5: #{tpu_custom_call.1} parent=1 // pred_fallthru
      _
    // Predicated region
    $region6: #{tpu_custom_call.1} parent=1 // pred_check
      _
    $region7: #{tpu_custom_call.1} parent=1 // pred_check_branch
      %27 = sbr.rel (0) target = $region9
    $region8: #{tpu_custom_call.1} parent=1 // pred_region
      _
    $region9: #{tpu_custom_call.1} parent=1 // pred_fallthru
      _
    // Predicated region
    $region10: #{tpu_custom_call.1} parent=1 // pred_check
      _
    $region11: #{tpu_custom_call.1} parent=1 // pred_check_branch
      %29 = sbr.rel (0) target = $region13
    $region12: #{tpu_custom_call.1} parent=1 // pred_region
      _
    $region13: #{tpu_custom_call.1} parent=1 // pred_fallthru
      _
    // Predicated region
    $region14: #{tpu_custom_call.1} parent=1 // pred_check
      _
    $region15: #{tpu_custom_call.1} parent=1 // pred_check_branch
      %31 = sbr.rel (0) target = $region17
    $region16: #{tpu_custom_call.1} parent=1 // pred_region
      %33 = dma.done [#allocation3], 256
    $region17: #{tpu_custom_call.1} parent=1 // pred_fallthru
      _
    %v34 = vld [vmem:[#allocation2] sm:$0xff]
    %v35 = vld [vmem:[#allocation2 + $0x8] sm:$0xff]
    %38 = vst [vmem:[#allocation1] ss:$2 sm:$0xff] %v34
    %v39 = vld.sshfl [vmem:[#allocation1] sm:$0xff pattern:$0x75316420]
    %v40 = vld.sshfl [vmem:[#allocation1 + $0x8] sm:$0xff pattern:$0x75316420]
    %s41 = scalar_lea.vmem [#allocation1], 16
    %42 = vst [vmem:[%s41] ss:$2 sm:$0xff] %v35
    %v43 = vld.sshfl [vmem:[#allocation1 + $0x10] sm:$0xff pattern:$0x75316420]
    %v44 = vld.sshfl [vmem:[#allocation1 + $0x18] sm:$0xff pattern:$0x75316420]
    %vm49 = vcmask 1043456
    %v50 = vsel %vm49, %v39, 0.0
    %v51 = vsel %vm49, %v40, 0.0
    %v52 = vadd.f32 %v50, %v51
    %53 = vadd.xlane.f32.xlu0 %v52
    %v54 = vpop.xlane.xlu0 %53
    %v55 = vsel %vm49, %v43, 0.0
    %v56 = vsel %vm49, %v44, 0.0
    %v57 = vadd.f32 %v55, %v56
    %58 = vadd.xlane.f32.xlu0 %v57
    %v59 = vpop.xlane.xlu0 %58
    %v60 = vsel %vm49, %v54, 0.0
    %v61 = vsel %vm49, %v59, 0.0
    %v62 = vadd.f32 %v60, %v61
    %v63 = vmul.f32 %v34, %v34
    %v64 = vmul.f32 %v35, %v35
    %67 = vst [vmem:[#allocation1] ss:$2 sm:$0xff] %v63
    %v68 = vld.sshfl [vmem:[#allocation1] sm:$0xff pattern:$0x75316420]
    %v69 = vld.sshfl [vmem:[#allocation1 + $0x8] sm:$0xff pattern:$0x75316420]
    %s70 = scalar_lea.vmem [#allocation1], 16
    %71 = vst [vmem:[%s70] ss:$2 sm:$0xff] %v64
    %v72 = vld.sshfl [vmem:[#allocation1 + $0x10] sm:$0xff pattern:$0x75316420]
    %v73 = vld.sshfl [vmem:[#allocation1 + $0x18] sm:$0xff pattern:$0x75316420]
    %v78 = vsel %vm49, %v68, 0.0
    %v79 = vsel %vm49, %v69, 0.0
    %v80 = vadd.f32 %v78, %v79
    %81 = vadd.xlane.f32.xlu0 %v80
    %v82 = vpop.xlane.xlu0 %81
    %v83 = vsel %vm49, %v72, 0.0
    %v84 = vsel %vm49, %v73, 0.0
    %v85 = vadd.f32 %v83, %v84
    %86 = vadd.xlane.f32.xlu0 %v85
    %v87 = vpop.xlane.xlu0 %86
    %v88 = vsel %vm49, %v82, 0.0
    %v89 = vsel %vm49, %v87, 0.0
    %v90 = vadd.f32 %v88, %v89
    %v91 = vmul.f32 %v62, 0.001953125
    %v92 = vmul.f32 %v90, 0.001953125
    %v93 = vmul.f32 %v91, %v91
    %v94 = vsub.f32 %v92, %v93
    %v95 = vadd.f32 %v94, 1e-05
    %v96 = vrsqrt.pop %v95
    %v97 = vmul.f32 %v96, %v95
    %v98 = vmul.f32 %v97, %v96
    %v99 = vmul.f32 0.5, %v98
    %v100 = vsub.f32 1.5, %v99
    %v101 = vmul.f32 %v96, %v100
    %vm102 = vweird.f32 %v95
    %vm103 = vweird.f32 %v96
    %vm104 = vmor %vm102, %vm103
    %v105 = vsel %vm104, %v96, %v101
    %v106 = vld [vmem:[%s1] sm:$0xf]
    %v107 = vmul.f32 %v105, %v106
    %v108 = vmul.f32 %v91, %v107
    %v109 = vld [vmem:[%s2] sm:$0xf]
    %v110 = vsub.f32 %v108, %v109
    %112 = vset.pattern.permute.xlu0 0
    %113 = vperm.xlu0 %112, %v107
    %v114 = vpop.permute.xlu0 %113
    %v116 = vunpack.c.l.s4 839922192
    %v117 = vunpack.c.0.s8 %v116
    %v118 = vperm.slane %v114, %v117
    %v120 = vmul.f32 %v34, %v118
    %v121 = vmul.f32 %v35, %v118
    %123 = vset.pattern.permute.xlu0 0
    %124 = vperm.xlu0 %123, %v110
    %v125 = vpop.permute.xlu0 %124
    %v127 = vunpack.c.l.s4 839922192
    %v128 = vunpack.c.0.s8 %v127
    %v129 = vperm.slane %v125, %v128
    %v131 = vsub.f32 %v120, %v129
    %v132 = vsub.f32 %v121, %v129
    %133 = vst [vmem:[#allocation5] sm:$0xff] %v131
    %134 = vst [vmem:[#allocation5 + $0x8] sm:$0xff] %v132
    %vm135 = vcmask 3072
    %136 = vst.msk [vmem:[%s4] sm:$0xf] %vm135, %v91
    %137 = vst.msk [vmem:[%s5] sm:$0xf] %vm135, %v94
    // Predicated region
    $region18: #{tpu_custom_call.1} parent=1 // pred_check
      _
    $region19: #{tpu_custom_call.1} parent=1 // pred_check_branch
      %139 = sbr.rel (0) target = $region21
    $region20: #{tpu_custom_call.1} parent=1 // pred_region
      %141 = vsyncadd [#allocation4], 0
      %s142 = sshll.u32 [#allocation5], 4
      %s143 = int_to_ptr.vmem [resolvable:$true] %s142
      %s144 = sshll.u32 %s3, 4
      %s145 = int_to_ptr.hbm [resolvable:$true] %s144
      %150 = dma.vmem_to_hbm [thread:$0]  %s143, 256, %s145, [#allocation4], 128, 128, 8
    $region21: #{tpu_custom_call.1} parent=1 // pred_fallthru
      _
    // Predicated region
    $region22: #{tpu_custom_call.1} parent=1 // pred_check
      _
    $region23: #{tpu_custom_call.1} parent=1 // pred_check_branch
      %152 = sbr.rel (0) target = $region25
    $region24: #{tpu_custom_call.1} parent=1 // pred_region
      _
    $region25: #{tpu_custom_call.1} parent=1 // pred_fallthru
      _
    // Predicated region
    $region26: #{tpu_custom_call.1} parent=1 // pred_check
      _
    $region27: #{tpu_custom_call.1} parent=1 // pred_check_branch
      %154 = sbr.rel (0) target = $region29
    $region28: #{tpu_custom_call.1} parent=1 // pred_region
      _
    $region29: #{tpu_custom_call.1} parent=1 // pred_fallthru
      _
    // Predicated region
    $region30: #{tpu_custom_call.1} parent=1 // pred_check
      _
    $region31: #{tpu_custom_call.1} parent=1 // pred_check_branch
      %156 = sbr.rel (0) target = $region33
    $region32: #{tpu_custom_call.1} parent=1 // pred_region
      %158 = dma.done [#allocation4], 256
    $region33: #{tpu_custom_call.1} parent=1 // pred_fallthru
      _
    // Predicated region
    $region34: #{tpu_custom_call.1} parent=1 // pred_check
      _
    $region35: #{tpu_custom_call.1} parent=1 // pred_check_branch
      %160 = sbr.rel (0) target = $region37
    $region36: #{tpu_custom_call.1} parent=1 // pred_region
      _
    $region37: #{tpu_custom_call.1} parent=1 // pred_fallthru
      _
    // Predicated region
    $region38: #{tpu_custom_call.1} parent=1 // pred_check
      _
    $region39: #{tpu_custom_call.1} parent=1 // pred_check_branch
      %162 = sbr.rel (0) target = $region41
    $region40: #{tpu_custom_call.1} parent=1 // pred_region
      _
    $region41: #{tpu_custom_call.1} parent=1 // pred_fallthru
      _
    %163 = vsyncpa [#allocation3], 1
    %164 = vsyncpa [#allocation4], 1

</llo_original>
